<compile_context>
chip_gen: v7x
topology: tpu7x:2x2x1
jax: 0.10.0
libtpu: 0.0.40
codegen_flags: <defaults>
</compile_context>

<pallas_src>
import jax
import jax.numpy as jnp
from jax.experimental import pallas as pl
from jax.experimental.pallas import tpu as pltpu

# ---- config consistent with CrAKNConfig (scaled down), batched per review ----
N          = 512                 # crystals (meta-vertices) per call
TILE_M     = 256                 # row tile: multiple of 8 (f32 sublanes)
BB_FEAT    = 32                  # backbone_config.output_features
EMB_DIM    = 128                 # config.embedding_dim
AMD_K      = 32                  # config.amd_k       (metric_struct_size)
COMP_FEAT  = 16                  # config.comp_feat_size (metric_comp_size)
OUT_FEAT   = 1                   # config.output_features
K_CAT      = BB_FEAT + AMD_K     # fused contraction dim of block-diag matmul
SLAB       = 2 * EMB_DIM         # [node_features | edge_features] lane-dense slab
PRED_LANES = 128                 # lane-dense prediction slab width


def _crakn_kernel(x_ref, w_cat_ref, b_cat_ref, w_out_ref, b_out_ref,
                  slab_ref, pred_ref):
    # Fused embedding + bias_embedding: one (TILE_M,K_CAT)@(K_CAT,SLAB) MXU pass.
    slab = jnp.dot(x_ref[...], w_cat_ref[...],
                   preferred_element_type=jnp.float32) + b_cat_ref[...]
    slab_ref[...] = slab                       # [nf | ef], single unmasked store

    # TODO(synk): CrAKNConv layers (node_features, edge_features = layer(nf, ef))
    # have no definition in the provided source; they are not emulated here.

    # predictions = self.out(node_features): Linear(EMB_DIM -> 1).
    # 1-column MXU matmul wastes a full MXU pass -> VPU multiply + XLU row-reduce,
    # broadcast across 128 lanes so the store is lane-dense (sliced in wrapper).
    nf = slab[:, :EMB_DIM]                                     # 128-aligned slice
    pred = jnp.sum(nf * w_out_ref[...], axis=-1, keepdims=True)   # (TILE_M, 1)
    pred_ref[...] = jnp.broadcast_to(pred, pred_ref.shape) + b_out_ref[...]


def crakn_forward(backbone_out, amds, params):
    """backbone_out: (N, BB_FEAT) crystal-level backbone features.
       amds:         (N, COMP_FEAT + AMD_K) composition+structure descriptors."""
    n_rows = backbone_out.shape[0]
    assert n_rows % TILE_M == 0

    # Glue (fused by XLA under jit): amds[:, metric_comp_size:] + concat for the
    # block-diagonal fused matmul input  X = [backbone_out | amd_slice]  (N, K_CAT).
    x_cat = jnp.concatenate([backbone_out, amds[:, COMP_FEAT:]], axis=-1)

    # Block-diagonal fused weight/bias (constant-folded under jit):
    #   W = [[w_emb, 0], [0, w_bias]] : (K_CAT, SLAB),  b = [b_emb | b_bias] : (1, SLAB)
    w_cat = jnp.zeros((K_CAT, SLAB), jnp.float32)
    w_cat = w_cat.at[:BB_FEAT, :EMB_DIM].set(params["w_emb"])
    w_cat = w_cat.at[BB_FEAT:, EMB_DIM:].set(params["w_bias"])
    b_cat = jnp.concatenate([params["b_emb"], params["b_bias"]], axis=-1)
    w_out_t = params["w_out"].T                                   # (1, EMB_DIM)
    b_out_b = jnp.broadcast_to(params["b_out"].reshape(1, 1), (1, PRED_LANES))

    grid = (n_rows // TILE_M,)
    row_in   = pl.BlockSpec((TILE_M, K_CAT),     lambda i: (i, 0))
    w_res    = pl.BlockSpec((K_CAT, SLAB),       lambda i: (0, 0))   # resident
    b_res    = pl.BlockSpec((1, SLAB),           lambda i: (0, 0))   # resident
    wout_res = pl.BlockSpec((1, EMB_DIM),        lambda i: (0, 0))   # resident
    bout_res = pl.BlockSpec((1, PRED_LANES),     lambda i: (0, 0))   # resident
    slab_out = pl.BlockSpec((TILE_M, SLAB),      lambda i: (i, 0))
    pred_out = pl.BlockSpec((TILE_M, PRED_LANES), lambda i: (i, 0))

    flops = 2 * n_rows * K_CAT * SLAB + 3 * n_rows * EMB_DIM
    bytes_accessed = 4 * (n_rows * K_CAT + K_CAT * SLAB + SLAB + EMB_DIM + PRED_LANES
                          + n_rows * SLAB + n_rows * PRED_LANES)

    slab, pred_slab = pl.pallas_call(
        _crakn_kernel,
        out_shape=(
            jax.ShapeDtypeStruct((n_rows, SLAB), jnp.float32),        # [nf | ef]
            jax.ShapeDtypeStruct((n_rows, PRED_LANES), jnp.float32),  # pred (bcast)
        ),
        grid=grid,
        in_specs=[row_in, w_res, b_res, wout_res, bout_res],
        out_specs=(slab_out, pred_out),
        compiler_params=pltpu.CompilerParams(
            dimension_semantics=("parallel",)),
        cost_estimate=pl.CostEstimate(flops=flops, transcendentals=0,
                                      bytes_accessed=bytes_accessed),
    )(x_cat, w_cat, b_cat, w_out_t, b_out_b)

    nf = slab[:, :EMB_DIM]
    ef = slab[:, EMB_DIM:]
    pred = pred_slab[:, :OUT_FEAT]
    return pred, nf, ef


crakn_forward_jit = jax.jit(crakn_forward)


def _reference(backbone_out, amds, params):
    amd_slice = amds[:, COMP_FEAT:]
    nf = backbone_out @ params["w_emb"] + params["b_emb"]
    ef = amd_slice @ params["w_bias"] + params["b_bias"]
    pred = nf @ params["w_out"] + params["b_out"]
    return pred, nf, ef


def init_params(key):
    ks = jax.random.split(key, 6)
    scale = 0.02
    return {
        # self.embedding : Linear(BB_FEAT -> EMB_DIM), stored (in, out)
        "w_emb":  scale * jax.random.normal(ks[0], (BB_FEAT, EMB_DIM), jnp.float32),
        "b_emb":  scale * jax.random.normal(ks[1], (1, EMB_DIM), jnp.float32),
        # self.bias_embedding : Linear(AMD_K -> EMB_DIM)
        "w_bias": scale * jax.random.normal(ks[2], (AMD_K, EMB_DIM), jnp.float32),
        "b_bias": scale * jax.random.normal(ks[3], (1, EMB_DIM), jnp.float32),
        # self.out : Linear(EMB_DIM -> OUT_FEAT)
        "w_out":  scale * jax.random.normal(ks[4], (EMB_DIM, OUT_FEAT), jnp.float32),
        "b_out":  scale * jax.random.normal(ks[5], (1, OUT_FEAT), jnp.float32),
    }


if __name__ == "__main__":
    key = jax.random.PRNGKey(0)
    k_bb, k_amd, k_p = jax.random.split(key, 3)

    # Backbone crystal-level output (stand-in for backbone(bb_X, 'crystal')).
    backbone_out = jax.random.normal(k_bb, (N, BB_FEAT), jnp.float32)
    # AMD / composition descriptors: (N, comp_feat_size + amd_k)
    amds = jax.random.normal(k_amd, (N, COMP_FEAT + AMD_K), jnp.float32)
    params = init_params(k_p)

    pred, nf, ef = jax.block_until_ready(crakn_forward_jit(backbone_out, amds, params))
    ref_pred, ref_nf, ref_ef = _reference(backbone_out, amds, params)

    assert pred.shape == (N, OUT_FEAT)
    assert nf.shape == (N, EMB_DIM) and ef.shape == (N, EMB_DIM)
    assert jnp.allclose(pred, ref_pred, atol=1e-4, rtol=1e-4)
    assert jnp.allclose(nf, ref_nf, atol=1e-4, rtol=1e-4)
    assert jnp.allclose(ef, ref_ef, atol=1e-4, rtol=1e-4)

    print("KERNEL_OK")
</pallas_src>

<mosaic_0001>
module attributes {stable_mosaic.version = 11 : i64} {
  func.func @_crakn_kernel(%arg0: i32, %arg1: memref<256x64xf32, #tpu.memory_space<vmem>>, %arg2: memref<64x256xf32, #tpu.memory_space<vmem>>, %arg3: memref<1x256xf32, #tpu.memory_space<vmem>>, %arg4: memref<1x128xf32, #tpu.memory_space<vmem>>, %arg5: memref<1x128xf32, #tpu.memory_space<vmem>>, %arg6: memref<256x256xf32, #tpu.memory_space<vmem>>, %arg7: memref<256x128xf32, #tpu.memory_space<vmem>>) attributes {dimension_semantics = [#tpu.dimension_semantics<parallel>], iteration_bounds = array<i64: 2>, scalar_prefetch = 0 : i64, scratch_operands = 0 : i64, tpu.core_type = #tpu.core_type<tc>, window_params = [{transform_indices = @transform_0, window_bounds = array<i64: 256, 64>}, {pipeline_mode = #tpu.pipeline_mode<synchronous>, transform_indices = @transform_1, window_bounds = array<i64: 64, 256>}, {pipeline_mode = #tpu.pipeline_mode<synchronous>, transform_indices = @transform_2, window_bounds = array<i64: 1, 256>}, {pipeline_mode = #tpu.pipeline_mode<synchronous>, transform_indices = @transform_3, window_bounds = array<i64: 1, 128>}, {pipeline_mode = #tpu.pipeline_mode<synchronous>, transform_indices = @transform_4, window_bounds = array<i64: 1, 128>}, {transform_indices = @transform_5, window_bounds = array<i64: 256, 256>}, {transform_indices = @transform_6, window_bounds = array<i64: 256, 128>}]} {
    %c0 = arith.constant 0 : index
    %c0_0 = arith.constant 0 : index
    %0 = vector.load %arg1[%c0, %c0_0] : memref<256x64xf32, #tpu.memory_space<vmem>>, vector<256x64xf32>
    %c0_1 = arith.constant 0 : index
    %c0_2 = arith.constant 0 : index
    %1 = vector.load %arg2[%c0_1, %c0_2] : memref<64x256xf32, #tpu.memory_space<vmem>>, vector<64x256xf32>
    %cst = arith.constant dense<0.000000e+00> : vector<256x256xf32>
    %2 = tpu.matmul %0, %1, %cst {dimension_numbers = #tpu.dot_dimension_numbers<[1], [0], [0], [1], [0, 0, 1, 1], [], []>} : vector<256x64xf32>, vector<64x256xf32>, vector<256x256xf32> -> vector<256x256xf32>
    %c0_3 = arith.constant 0 : index
    %c0_4 = arith.constant 0 : index
    %3 = vector.load %arg3[%c0_3, %c0_4] : memref<1x256xf32, #tpu.memory_space<vmem>>, vector<1x256xf32>
    %4 = vector.broadcast %3 : vector<1x256xf32> to vector<256x256xf32>
    %5 = arith.addf %2, %4 : vector<256x256xf32>
    %c0_5 = arith.constant 0 : index
    %c0_6 = arith.constant 0 : index
    %6 = vector.load %arg6[%c0_5, %c0_6] : memref<256x256xf32, #tpu.memory_space<vmem>>, vector<256x256xf32>
    tpu.vector_store %arg6[%c0_5, %c0_6], %5 {strides = array<i32>} : memref<256x256xf32, #tpu.memory_space<vmem>>, vector<256x256xf32>,
    %7 = vector.extract_strided_slice %5 {offsets = [0, 0], sizes = [256, 128], strides = [1, 1]} : vector<256x256xf32> to vector<256x128xf32>
    %c0_7 = arith.constant 0 : index
    %c0_8 = arith.constant 0 : index
    %8 = vector.load %arg4[%c0_7, %c0_8] : memref<1x128xf32, #tpu.memory_space<vmem>>, vector<1x128xf32>
    %9 = vector.broadcast %8 : vector<1x128xf32> to vector<256x128xf32>
    %10 = arith.mulf %7, %9 : vector<256x128xf32>
    %cst_9 = arith.constant dense<0.000000e+00> : vector<256xf32>
    %11 = vector.multi_reduction <add>, %10, %cst_9 [1] : vector<256x128xf32> to vector<256xf32>
    %12 = vector.shape_cast %11 : vector<256xf32> to vector<256x1xf32>
    %13 = vector.shape_cast %12 : vector<256x1xf32> to vector<256x1xf32>
    %14 = vector.broadcast %13 : vector<256x1xf32> to vector<256x128xf32>
    %c0_10 = arith.constant 0 : index
    %c0_11 = arith.constant 0 : index
    %15 = vector.load %arg5[%c0_10, %c0_11] : memref<1x128xf32, #tpu.memory_space<vmem>>, vector<1x128xf32>
    %16 = vector.broadcast %15 : vector<1x128xf32> to vector<256x128xf32>
    %17 = arith.addf %14, %16 : vector<256x128xf32>
    %c0_12 = arith.constant 0 : index
    %c0_13 = arith.constant 0 : index
    %18 = vector.load %arg7[%c0_12, %c0_13] : memref<256x128xf32, #tpu.memory_space<vmem>>, vector<256x128xf32>
    tpu.vector_store %arg7[%c0_12, %c0_13], %17 {strides = array<i32>} : memref<256x128xf32, #tpu.memory_space<vmem>>, vector<256x128xf32>,
    return
  }
  func.func @transform_0(%arg0: i32) -> (i32, i32) {
    %c0_i32 = arith.constant 0 : i32
    %c0_i32_0 = arith.constant 0 : i32
    return %arg0, %c0_i32 : i32, i32
  }
  func.func @transform_1(%arg0: i32) -> (i32, i32) {
    %c0_i32 = arith.constant 0 : i32
    %c0_i32_0 = arith.constant 0 : i32
    %c0_i32_1 = arith.constant 0 : i32
    return %c0_i32, %c0_i32_0 : i32, i32
  }
  func.func @transform_2(%arg0: i32) -> (i32, i32) {
    %c0_i32 = arith.constant 0 : i32
    %c0_i32_0 = arith.constant 0 : i32
    %c0_i32_1 = arith.constant 0 : i32
    return %c0_i32, %c0_i32_0 : i32, i32
  }
  func.func @transform_3(%arg0: i32) -> (i32, i32) {
    %c0_i32 = arith.constant 0 : i32
    %c0_i32_0 = arith.constant 0 : i32
    %c0_i32_1 = arith.constant 0 : i32
    return %c0_i32, %c0_i32_0 : i32, i32
  }
  func.func @transform_4(%arg0: i32) -> (i32, i32) {
    %c0_i32 = arith.constant 0 : i32
    %c0_i32_0 = arith.constant 0 : i32
    %c0_i32_1 = arith.constant 0 : i32
    return %c0_i32, %c0_i32_0 : i32, i32
  }
  func.func @transform_5(%arg0: i32) -> (i32, i32) {
    %c0_i32 = arith.constant 0 : i32
    %c0_i32_0 = arith.constant 0 : i32
    return %arg0, %c0_i32 : i32, i32
  }
  func.func @transform_6(%arg0: i32) -> (i32, i32) {
    %c0_i32 = arith.constant 0 : i32
    %c0_i32_0 = arith.constant 0 : i32
    return %arg0, %c0_i32 : i32, i32
  }
}

</mosaic_0001>

<llo_original>
// kernel: crakn_forward.1
$region0: #{crakn_forward.1}
  #allocation0 [shape = 'u32[]', space=smem, size = 0x4, offset = 0x4, fixed_abs, tag = 'smem constant byte address 0x4 - core index']
  #allocation1 [shape = 'u32[144,128]{1,0:T(1,128)}', space=vmem, size = 0x12000, scoped, tag = 'internal scratch']
  %s0 = inlined_call_operand.vmem [shape: f32[512,64], index: 0, kind: input, shape index: {}]
  %s1 = inlined_call_operand.vmem [shape: f32[64,256], index: 1, kind: input, shape index: {}]
  %s2 = inlined_call_operand.vmem [shape: f32[1,256], index: 2, kind: input, shape index: {}]
  %s3 = inlined_call_operand.vmem [shape: f32[1,128], index: 3, kind: input, shape index: {}]
  %s4 = inlined_call_operand.vmem [shape: f32[1,128], index: 4, kind: input, shape index: {}]
  %s5 = inlined_call_operand.vmem [shape: f32[512,256], index: 5, kind: output, shape index: {0}]
  %s6 = inlined_call_operand.vmem [shape: f32[512,128], index: 6, kind: output, shape index: {1}]
  %7 = xla_tuple %s5, %s6
  %s8 = sld [smem:[#allocation0]]
  $region61: #{crakn_forward.1} parent=0
    _
  %s10 = ssub.s32 1, %s8
  %s11 = scalar_select 0, %s10, %s8
  loop: start=0, step=1, limit=4
  $region2: #{crakn_forward.1} parent=0 // loop_pre_header
    _
  $region3: #{crakn_forward.1} parent=0 // loop_header
    %s13 = sphi 0, %s17
    %p14 = scmp.ge.s32.totalorder %s13, 4
    %s23 = sphi 0, %s25
    %s26 = sphi 0, %s23
    %s27 = sphi 0, %s26
    %s43 = sphi 0, %s27
    %s47 = sphi 0, %s47
    %s49 = sphi 0, %s47
    %s50 = sphi 0, %s49
    %s64 = sphi 0, %s50
    %s68 = sphi 0, %s68
    %s70 = sphi 0, %s68
    %s71 = sphi 0, %s70
    %s85 = sphi 0, %s71
    %s89 = sphi 0, %s89
    %s91 = sphi 0, %s89
    %s92 = sphi 0, %s91
    %s106 = sphi 0, %s92
    %s110 = sphi 0, %s110
    %s112 = sphi 0, %s110
    %s113 = sphi 0, %s112
    %s127 = sphi 0, %s113
    %s133 = sphi 0, %s135
    %s136 = sphi 0, %s133
    %s137 = sphi 0, %s136
    %s153 = sphi 0, %s137
    %s159 = sphi 0, %s161
    %s162 = sphi 0, %s159
    %s163 = sphi 0, %s162
    %s179 = sphi 0, %s163
  $region4: #{crakn_forward.1} parent=0 // loop_header_branch
    %16 = sbr.rel (%p14) target = $region8
  $region5: #{crakn_forward.1} parent=0 // loop_body
    %s18 = ssub.s32 %s13, 1
    %s19 = ssub.s32 %s13, 2
    %s20 = sadd.s32 %s13, 1
    %s21 = ssub.s32 %s13, %s20
    %p22 = scmp.eq.s32.totalorder %s21, 0
    %s24 = sadd.s32 %s23, 1
    %s25 = scalar_select %p22, %s23, %s24
    %p28 = pneg %p22
    %p29 = scmp.eq.s32.totalorder %s13, 1
    %p30 = por %p28, %p29
    %p31 = scmp.ne.s32.totalorder %s23, %s26
    %p32 = scmp.eq.s32.totalorder %s13, 0
    %p33 = por %p31, %p32
    %p34 = scmp.ne.s32.totalorder %s23, %s26
    %p35 = scmp.eq.s32.totalorder %s18, 1
    %p36 = por %p34, %p35
    %p37 = scmp.ne.s32.totalorder %s26, %s27
    %p38 = scmp.eq.s32.totalorder %s18, 0
    %p39 = por %p37, %p38
    %p40 = scmp.ne.s32.totalorder %s26, %s27
    %p41 = scmp.eq.s32.totalorder %s19, 1
    %p42 = por %p40, %p41
    %p44 = scmp.ne.s32.totalorder %s27, %s43
    %p45 = scmp.eq.s32.totalorder %s19, 0
    %p46 = por %p44, %p45
    %s48 = sadd.s32 %s47, 1
    %p51 = scmp.eq.s32.totalorder %s13, 1
    %p52 = scmp.ne.s32.totalorder %s47, %s49
    %p53 = scmp.eq.s32.totalorder %s13, 0
    %p54 = por %p52, %p53
    %p55 = scmp.ne.s32.totalorder %s47, %s49
    %p56 = scmp.eq.s32.totalorder %s18, 1
    %p57 = por %p55, %p56
    %p58 = scmp.ne.s32.totalorder %s49, %s50
    %p59 = scmp.eq.s32.totalorder %s18, 0
    %p60 = por %p58, %p59
    %p61 = scmp.ne.s32.totalorder %s49, %s50
    %p62 = scmp.eq.s32.totalorder %s19, 1
    %p63 = por %p61, %p62
    %p65 = scmp.ne.s32.totalorder %s50, %s64
    %p66 = scmp.eq.s32.totalorder %s19, 0
    %p67 = por %p65, %p66
    %s69 = sadd.s32 %s68, 1
    %p72 = scmp.eq.s32.totalorder %s13, 1
    %p73 = scmp.ne.s32.totalorder %s68, %s70
    %p74 = scmp.eq.s32.totalorder %s13, 0
    %p75 = por %p73, %p74
    %p76 = scmp.ne.s32.totalorder %s68, %s70
    %p77 = scmp.eq.s32.totalorder %s18, 1
    %p78 = por %p76, %p77
    %p79 = scmp.ne.s32.totalorder %s70, %s71
    %p80 = scmp.eq.s32.totalorder %s18, 0
    %p81 = por %p79, %p80
    %p82 = scmp.ne.s32.totalorder %s70, %s71
    %p83 = scmp.eq.s32.totalorder %s19, 1
    %p84 = por %p82, %p83
    %p86 = scmp.ne.s32.totalorder %s71, %s85
    %p87 = scmp.eq.s32.totalorder %s19, 0
    %p88 = por %p86, %p87
    %s90 = sadd.s32 %s89, 1
    %p93 = scmp.eq.s32.totalorder %s13, 1
    %p94 = scmp.ne.s32.totalorder %s89, %s91
    %p95 = scmp.eq.s32.totalorder %s13, 0
    %p96 = por %p94, %p95
    %p97 = scmp.ne.s32.totalorder %s89, %s91
    %p98 = scmp.eq.s32.totalorder %s18, 1
    %p99 = por %p97, %p98
    %p100 = scmp.ne.s32.totalorder %s91, %s92
    %p101 = scmp.eq.s32.totalorder %s18, 0
    %p102 = por %p100, %p101
    %p103 = scmp.ne.s32.totalorder %s91, %s92
    %p104 = scmp.eq.s32.totalorder %s19, 1
    %p105 = por %p103, %p104
    %p107 = scmp.ne.s32.totalorder %s92, %s106
    %p108 = scmp.eq.s32.totalorder %s19, 0
    %p109 = por %p107, %p108
    %s111 = sadd.s32 %s110, 1
    %p114 = scmp.eq.s32.totalorder %s13, 1
    %p115 = scmp.ne.s32.totalorder %s110, %s112
    %p116 = scmp.eq.s32.totalorder %s13, 0
    %p117 = por %p115, %p116
    %p118 = scmp.ne.s32.totalorder %s110, %s112
    %p119 = scmp.eq.s32.totalorder %s18, 1
    %p120 = por %p118, %p119
    %p121 = scmp.ne.s32.totalorder %s112, %s113
    %p122 = scmp.eq.s32.totalorder %s18, 0
    %p123 = por %p121, %p122
    %p124 = scmp.ne.s32.totalorder %s112, %s113
    %p125 = scmp.eq.s32.totalorder %s19, 1
    %p126 = por %p124, %p125
    %p128 = scmp.ne.s32.totalorder %s113, %s127
    %p129 = scmp.eq.s32.totalorder %s19, 0
    %p130 = por %p128, %p129
    %s131 = ssub.s32 %s13, %s20
    %p132 = scmp.eq.s32.totalorder %s131, 0
    %s134 = sadd.s32 %s133, 1
    %s135 = scalar_select %p132, %s133, %s134
    %p138 = pneg %p132
    %p139 = scmp.eq.s32.totalorder %s13, 1
    %p140 = por %p138, %p139
    %p141 = scmp.ne.s32.totalorder %s133, %s136
    %p142 = scmp.eq.s32.totalorder %s13, 0
    %p143 = por %p141, %p142
    %p144 = scmp.ne.s32.totalorder %s133, %s136
    %p145 = scmp.eq.s32.totalorder %s18, 1
    %p146 = por %p144, %p145
    %p147 = scmp.ne.s32.totalorder %s136, %s137
    %p148 = scmp.eq.s32.totalorder %s18, 0
    %p149 = por %p147, %p148
    %p150 = scmp.ne.s32.totalorder %s136, %s137
    %p151 = scmp.eq.s32.totalorder %s19, 1
    %p152 = por %p150, %p151
    %p154 = scmp.ne.s32.totalorder %s137, %s153
    %p155 = scmp.eq.s32.totalorder %s19, 0
    %p156 = por %p154, %p155
    %s157 = ssub.s32 %s13, %s20
    %p158 = scmp.eq.s32.totalorder %s157, 0
    %s160 = sadd.s32 %s159, 1
    %s161 = scalar_select %p158, %s159, %s160
    %p164 = pneg %p158
    %p165 = scmp.eq.s32.totalorder %s13, 1
    %p166 = por %p164, %p165
    %p167 = scmp.ne.s32.totalorder %s159, %s162
    %p168 = scmp.eq.s32.totalorder %s13, 0
    %p169 = por %p167, %p168
    %p170 = scmp.ne.s32.totalorder %s159, %s162
    %p171 = scmp.eq.s32.totalorder %s18, 1
    %p172 = por %p170, %p171
    %p173 = scmp.ne.s32.totalorder %s162, %s163
    %p174 = scmp.eq.s32.totalorder %s18, 0
    %p175 = por %p173, %p174
    %p176 = scmp.ne.s32.totalorder %s162, %s163
    %p177 = scmp.eq.s32.totalorder %s19, 1
    %p178 = por %p176, %p177
    %p180 = scmp.ne.s32.totalorder %s163, %s179
    %p181 = scmp.eq.s32.totalorder %s19, 0
    %p182 = por %p180, %p181
    %p183 = scmp.le.s32.totalorder 1, %s13
    %p184 = scmp.lt.s32.totalorder %s13, 3
    %p185 = pnand %p183, %p184
    %p186 = pneg %p185
    // Predicated region
    $region9: #{crakn_forward.1} parent=5 // pred_check
      _
    $region10: #{crakn_forward.1} parent=5 // pred_check_branch
      %188 = sbr.rel (%p185) target = $region12
    $region11: #{crakn_forward.1} parent=5 // pred_region
      %s189 = ssub.s32 %s13, 1
      // Predicated region
      $region13: #{crakn_forward.1} parent=11 // pred_check
        %p190 = pneg %p60
      $region14: #{crakn_forward.1} parent=11 // pred_check_branch
        %192 = sbr.rel (%p190) target = $region16
      $region15: #{crakn_forward.1} parent=11 // pred_region
        _
      $region16: #{crakn_forward.1} parent=11 // pred_fallthru
        _
      // Predicated region
      $region17: #{crakn_forward.1} parent=11 // pred_check
        %p193 = pneg %p81
      $region18: #{crakn_forward.1} parent=11 // pred_check_branch
        %195 = sbr.rel (%p193) target = $region20
      $region19: #{crakn_forward.1} parent=11 // pred_region
        _
      $region20: #{crakn_forward.1} parent=11 // pred_fallthru
        _
      // Predicated region
      $region21: #{crakn_forward.1} parent=11 // pred_check
        %p196 = pneg %p102
      $region22: #{crakn_forward.1} parent=11 // pred_check_branch
        %198 = sbr.rel (%p196) target = $region24
      $region23: #{crakn_forward.1} parent=11 // pred_region
        _
      $region24: #{crakn_forward.1} parent=11 // pred_fallthru
        _
      // Predicated region
      $region25: #{crakn_forward.1} parent=11 // pred_check
        %p199 = pneg %p123
      $region26: #{crakn_forward.1} parent=11 // pred_check_branch
        %201 = sbr.rel (%p199) target = $region28
      $region27: #{crakn_forward.1} parent=11 // pred_region
        _
      $region28: #{crakn_forward.1} parent=11 // pred_fallthru
        _
    $region12: #{crakn_forward.1} parent=5 // pred_fallthru
      _
    %p202 = scmp.lt.s32.totalorder %s13, 2
    // Predicated region
    $region29: #{crakn_forward.1} parent=5 // pred_check
      %p203 = pneg %p202
    $region30: #{crakn_forward.1} parent=5 // pred_check_branch
      %205 = sbr.rel (%p203) target = $region32
    $region31: #{crakn_forward.1} parent=5 // pred_region
      // Predicated region
      $region33: #{crakn_forward.1} parent=31 // pred_check
        %p206 = pneg %p33
      $region34: #{crakn_forward.1} parent=31 // pred_check_branch
        %208 = sbr.rel (%p206) target = $region36
      $region35: #{crakn_forward.1} parent=31 // pred_region
        %s209 = smul.u32 32, %s13
        %p210 = scmp.lt.s32.totalorder %s209, 63
        %s211 = scalar_select %p210, %s209, 63
        %s212 = smul.addr %s211, 8
        %s213 = scalar_lea.vmem %s0, %s212
        %s214 = smul.u32 32, %s13
      $region36: #{crakn_forward.1} parent=31 // pred_fallthru
        _
    $region32: #{crakn_forward.1} parent=5 // pred_fallthru
      _
    %p215 = scmp.le.s32.totalorder 1, %s13
    %p216 = scmp.lt.s32.totalorder %s13, 3
    %p217 = pnand %p215, %p216
    %p218 = pneg %p217
    // Predicated region
    $region37: #{crakn_forward.1} parent=5 // pred_check
      _
    $region38: #{crakn_forward.1} parent=5 // pred_check_branch
      %220 = sbr.rel (%p217) target = $region40
    $region39: #{crakn_forward.1} parent=5 // pred_region
      %s221 = ssub.s32 %s13, 1
      %s222 = smul.u32 32, %s18
      %p223 = scmp.lt.s32.totalorder %s222, 63
      %s224 = scalar_select %p223, %s222, 63
      %s225 = smul.addr %s224, 8
      %s226 = scalar_lea.vmem %s0, %s225
      %p227 = pneg %p39
      %p228 = pneg %p36
      %p229 = pneg %p60
      %p230 = pneg %p57
      %p231 = pneg %p81
      %p232 = pneg %p78
      %p233 = pneg %p102
      %p234 = pneg %p99
      %p235 = pneg %p123
      %p236 = pneg %p120
      %p237 = pneg %p149
      %p238 = pneg %p146
      %s239 = smul.u32 32, %s18
      %p240 = scmp.lt.s32.totalorder %s239, 63
      %s241 = scalar_select %p240, %s239, 63
      %s242 = smul.addr %s241, 2
      %s243 = smul.addr %s242, 8
      %s244 = scalar_lea.vmem %s5, %s243
      %p245 = pneg %p175
      %p246 = pneg %p172
      %s247 = smul.u32 32, %s18
      %p248 = scmp.lt.s32.totalorder %s247, 63
      %s249 = scalar_select %p248, %s247, 63
      %s250 = smul.addr %s249, 8
      %s251 = scalar_lea.vmem %s6, %s250
      %s252 = smul.u32 32, %s18
      %p253 = scmp.lt.s32.totalorder %s252, 63
      %s254 = scalar_select %p253, %s252, 63
      %s255 = smul.addr %s254, 8
      %s256 = scalar_lea.vmem %s0, %s255
      %s257 = smul.u32 32, %s18
      %s258 = smul.u32 32, %s18
      %p259 = scmp.lt.s32.totalorder %s258, 63
      %s260 = scalar_select %p259, %s258, 63
      %s261 = smul.addr %s260, 2
      %s262 = smul.addr %s261, 8
      %s263 = scalar_lea.vmem %s5, %s262
      %s264 = smul.u32 32, %s18
      %s265 = smul.u32 32, %s18
      %p266 = scmp.lt.s32.totalorder %s265, 63
      %s267 = scalar_select %p266, %s265, 63
      %s268 = smul.addr %s267, 8
      %s269 = scalar_lea.vmem %s6, %s268
      %s270 = smul.u32 32, %s18
      %v271 = vld [vmem:[%s256] sm:$0xff]
      %v272 = vld [vmem:[%s256 + $0x8] sm:$0xff]
      %v273 = vld [vmem:[%s256 + $0x10] sm:$0xff]
      %v274 = vld [vmem:[%s256 + $0x18] sm:$0xff]
      %v275 = vld [vmem:[%s256 + $0x20] sm:$0xff]
      %v276 = vld [vmem:[%s256 + $0x28] sm:$0xff]
      %v277 = vld [vmem:[%s256 + $0x30] sm:$0xff]
      %v278 = vld [vmem:[%s256 + $0x38] sm:$0xff]
      %v279 = vld [vmem:[%s256 + $0x40] sm:$0xff]
      %v280 = vld [vmem:[%s256 + $0x48] sm:$0xff]
      %v281 = vld [vmem:[%s256 + $0x50] sm:$0xff]
      %v282 = vld [vmem:[%s256 + $0x58] sm:$0xff]
      %v283 = vld [vmem:[%s256 + $0x60] sm:$0xff]
      %v284 = vld [vmem:[%s256 + $0x68] sm:$0xff]
      %v285 = vld [vmem:[%s256 + $0x70] sm:$0xff]
      %v286 = vld [vmem:[%s256 + $0x78] sm:$0xff]
      %v287 = vld [vmem:[%s256 + $0x80] sm:$0xff]
      %v288 = vld [vmem:[%s256 + $0x88] sm:$0xff]
      %v289 = vld [vmem:[%s256 + $0x90] sm:$0xff]
      %v290 = vld [vmem:[%s256 + $0x98] sm:$0xff]
      %v291 = vld [vmem:[%s256 + $0xa0] sm:$0xff]
      %v292 = vld [vmem:[%s256 + $0xa8] sm:$0xff]
      %v293 = vld [vmem:[%s256 + $0xb0] sm:$0xff]
      %v294 = vld [vmem:[%s256 + $0xb8] sm:$0xff]
      %v295 = vld [vmem:[%s256 + $0xc0] sm:$0xff]
      %v296 = vld [vmem:[%s256 + $0xc8] sm:$0xff]
      %v297 = vld [vmem:[%s256 + $0xd0] sm:$0xff]
      %v298 = vld [vmem:[%s256 + $0xd8] sm:$0xff]
      %v299 = vld [vmem:[%s256 + $0xe0] sm:$0xff]
      %v300 = vld [vmem:[%s256 + $0xe8] sm:$0xff]
      %v301 = vld [vmem:[%s256 + $0xf0] sm:$0xff]
      %v302 = vld [vmem:[%s256 + $0xf8] sm:$0xff]
      %v303 = vld [vmem:[%s1] sm:$0xff]
      %v304 = vld [vmem:[%s1 + $0x8] sm:$0xff]
      %v305 = vld [vmem:[%s1 + $0x10] sm:$0xff]
      %v306 = vld [vmem:[%s1 + $0x18] sm:$0xff]
      %v307 = vld [vmem:[%s1 + $0x20] sm:$0xff]
      %v308 = vld [vmem:[%s1 + $0x28] sm:$0xff]
      %v309 = vld [vmem:[%s1 + $0x30] sm:$0xff]
      %v310 = vld [vmem:[%s1 + $0x38] sm:$0xff]
      %v311 = vld [vmem:[%s1 + $0x40] sm:$0xff]
      %v312 = vld [vmem:[%s1 + $0x48] sm:$0xff]
      %v313 = vld [vmem:[%s1 + $0x50] sm:$0xff]
      %v314 = vld [vmem:[%s1 + $0x58] sm:$0xff]
      %v315 = vld [vmem:[%s1 + $0x60] sm:$0xff]
      %v316 = vld [vmem:[%s1 + $0x68] sm:$0xff]
      %v317 = vld [vmem:[%s1 + $0x70] sm:$0xff]
      %v318 = vld [vmem:[%s1 + $0x78] sm:$0xff]
      %v319 = vld [vmem:[%s2] sm:$0x3]
      %v321 = vlaneseq
      %v322 = vshrl.u32 %v321, 7
      %v323 = vsub.s32 0, %v322
      %v324 = vrot.slane %v319, %v323
      %v325 = vlaneseq
      %v326 = vshrl.u32 %v325, 7
      %v327 = vsub.s32 1, %v326
      %v328 = vrot.slane %v319, %v327
      %vm331 = vcmask 523264
      %v333 = vsel %vm331, %v271, 0
      %v336 = vsel %vm331, %v272, 0
      %v339 = vsel %vm331, %v273, 0
      %v342 = vsel %vm331, %v274, 0
      %v345 = vsel %vm331, %v275, 0
      %v348 = vsel %vm331, %v276, 0
      %v351 = vsel %vm331, %v277, 0
      %v354 = vsel %vm331, %v278, 0
      %v357 = vsel %vm331, %v279, 0
      %v360 = vsel %vm331, %v280, 0
      %v363 = vsel %vm331, %v281, 0
      %v366 = vsel %vm331, %v282, 0
      %v369 = vsel %vm331, %v283, 0
      %v372 = vsel %vm331, %v284, 0
      %v375 = vsel %vm331, %v285, 0
      %v378 = vsel %vm331, %v286, 0
      %v381 = vsel %vm331, %v287, 0
      %v384 = vsel %vm331, %v288, 0
      %v387 = vsel %vm331, %v289, 0
      %v390 = vsel %vm331, %v290, 0
      %v393 = vsel %vm331, %v291, 0
      %v396 = vsel %vm331, %v292, 0
      %v399 = vsel %vm331, %v293, 0
      %v402 = vsel %vm331, %v294, 0
      %v405 = vsel %vm331, %v295, 0
      %v408 = vsel %vm331, %v296, 0
      %v411 = vsel %vm331, %v297, 0
      %v414 = vsel %vm331, %v298, 0
      %v417 = vsel %vm331, %v299, 0
      %v420 = vsel %vm331, %v300, 0
      %v423 = vsel %vm331, %v301, 0
      %v426 = vsel %vm331, %v302, 0
      %428 = vmatprep.subr.mxu0 %v304
      %429 = vmatpush1.msra.mxu0 %v303
      %430 = vmatprep.subr.mxu0 %v306
      %431 = vmatpush1.msra.mxu0 %v305
      %432 = vmatprep.subr.mxu0 %v308
      %433 = vmatpush1.msra.mxu0 %v307
      %434 = vmatprep.subr.mxu0 %v310
      %435 = vmatpush1.msra.mxu0 %v309
      %436 = vmatprep.subr.mxu0 %v312
      %437 = vmatpush1.msra.mxu0 %v311
      %438 = vmatprep.subr.mxu0 %v314
      %439 = vmatpush1.msra.mxu0 %v313
      %440 = vmatprep.subr.mxu0 %v316
      %441 = vmatpush1.msra.mxu0 %v315
      %442 = vmatprep.subr.mxu0 %v318
      %443 = vmatpush1.msra.mxu0 %v317
      %444 = vmatprep.subr.mxu0 0.0
      %445 = vmatpush1.msra.mxu0 0.0
      %446 = vmatprep.subr.mxu0 0.0
      %447 = vmatpush1.msra.mxu0 0.0
      %448 = vmatprep.subr.mxu0 0.0
      %449 = vmatpush1.msra.mxu0 0.0
      %450 = vmatprep.subr.mxu0 0.0
      %451 = vmatpush1.msra.mxu0 0.0
      %452 = vmatprep.subr.mxu0 0.0
      %453 = vmatpush1.msra.mxu0 0.0
      %454 = vmatprep.subr.mxu0 0.0
      %455 = vmatpush1.msra.mxu0 0.0
      %456 = vmatprep.subr.mxu0 0.0
      %457 = vmatpush1.msra.mxu0 0.0
      %458 = vmatprep.subr.mxu0 0.0
      %459 = vmatpush1.msra.mxu0 0.0
      %460 = vmatprep.subr.mxu0 0.0
      %461 = vmatpush1.msra.mxu0 0.0
      %462 = vmatprep.subr.mxu0 0.0
      %463 = vmatpush1.msra.mxu0 0.0
      %464 = vmatprep.subr.mxu0 0.0
      %465 = vmatpush1.msra.mxu0 0.0
      %466 = vmatprep.subr.mxu0 0.0
      %467 = vmatpush1.msra.mxu0 0.0
      %468 = vmatprep.subr.mxu0 0.0
      %469 = vmatpush1.msra.mxu0 0.0
      %470 = vmatprep.subr.mxu0 0.0
      %471 = vmatpush1.msra.mxu0 0.0
      %472 = vmatprep.subr.mxu0 0.0
      %473 = vmatpush1.msra.mxu0 0.0
      %474 = vmatprep.subr.mxu0 0.0
      %475 = vmatpush1.msra.mxu0 0.0
      %476 = vmatprep.subr.mxu0 0.0
      %477 = vmatpush1.msra.mxu0 0.0
      %478 = vmatprep.subr.mxu0 0.0
      %479 = vmatpush1.msra.mxu0 0.0
      %480 = vmatprep.subr.mxu0 0.0
      %481 = vmatpush1.msra.mxu0 0.0
      %482 = vmatprep.subr.mxu0 0.0
      %483 = vmatpush1.msra.mxu0 0.0
      %484 = vmatprep.subr.mxu0 0.0
      %485 = vmatpush1.msra.mxu0 0.0
      %486 = vmatprep.subr.mxu0 0.0
      %487 = vmatpush1.msra.mxu0 0.0
      %488 = vmatprep.subr.mxu0 0.0
      %489 = vmatpush1.msra.mxu0 0.0
      %490 = vmatprep.subr.mxu0 0.0
      %491 = vmatpush1.msra.mxu0 0.0
      %492 = vmatprep.mubr.f32.mxu0 0.0
      %493 = vmatmul.mubr.f32.gmra.mrb[0].mxu0 %v333
      %v494 = vpop.f32.mrb[0].mxu0
      %v495 = vadd.f32 %v324, %v494
      %v496 = vpop.f32.mrb[0].mxu0
      %v497 = vadd.f32 %v328, %v496
      %498 = vmatprep.mubr.f32.mxu0 0.0
      %499 = vmatmul.mubr.f32.gmra.mrb[0].mxu0 %v336
      %v500 = vpop.f32.mrb[0].mxu0
      %v501 = vadd.f32 %v324, %v500
      %v502 = vpop.f32.mrb[0].mxu0
      %v503 = vadd.f32 %v328, %v502
      %504 = vmatprep.mubr.f32.mxu0 0.0
      %505 = vmatmul.mubr.f32.gmra.mrb[0].mxu0 %v339
      %v506 = vpop.f32.mrb[0].mxu0
      %v507 = vadd.f32 %v324, %v506
      %v508 = vpop.f32.mrb[0].mxu0
      %v509 = vadd.f32 %v328, %v508
      %510 = vmatprep.mubr.f32.mxu0 0.0
      %511 = vmatmul.mubr.f32.gmra.mrb[0].mxu0 %v342
      %v512 = vpop.f32.mrb[0].mxu0
      %v513 = vadd.f32 %v324, %v512
      %v514 = vpop.f32.mrb[0].mxu0
      %v515 = vadd.f32 %v328, %v514
      %516 = vmatprep.mubr.f32.mxu0 0.0
      %517 = vmatmul.mubr.f32.gmra.mrb[0].mxu0 %v345
      %v518 = vpop.f32.mrb[0].mxu0
      %v519 = vadd.f32 %v324, %v518
      %v520 = vpop.f32.mrb[0].mxu0
      %v521 = vadd.f32 %v328, %v520
      %522 = vmatprep.mubr.f32.mxu0 0.0
      %523 = vmatmul.mubr.f32.gmra.mrb[0].mxu0 %v348
      %v524 = vpop.f32.mrb[0].mxu0
      %v525 = vadd.f32 %v324, %v524
      %v526 = vpop.f32.mrb[0].mxu0
      %v527 = vadd.f32 %v328, %v526
      %528 = vmatprep.mubr.f32.mxu0 0.0
      %529 = vmatmul.mubr.f32.gmra.mrb[0].mxu0 %v351
      %v530 = vpop.f32.mrb[0].mxu0
      %v531 = vadd.f32 %v324, %v530
      %v532 = vpop.f32.mrb[0].mxu0
      %v533 = vadd.f32 %v328, %v532
      %534 = vmatprep.mubr.f32.mxu0 0.0
      %535 = vmatmul.mubr.f32.gmra.mrb[0].mxu0 %v354
      %v536 = vpop.f32.mrb[0].mxu0
      %v537 = vadd.f32 %v324, %v536
      %v538 = vpop.f32.mrb[0].mxu0
      %v539 = vadd.f32 %v328, %v538
      %540 = vmatprep.mubr.f32.mxu0 0.0
      %541 = vmatmul.mubr.f32.gmra.mrb[0].mxu0 %v357
      %v542 = vpop.f32.mrb[0].mxu0
      %v543 = vadd.f32 %v324, %v542
      %v544 = vpop.f32.mrb[0].mxu0
      %v545 = vadd.f32 %v328, %v544
      %546 = vmatprep.mubr.f32.mxu0 0.0
      %547 = vmatmul.mubr.f32.gmra.mrb[0].mxu0 %v360
      %v548 = vpop.f32.mrb[0].mxu0
      %v549 = vadd.f32 %v324, %v548
      %v550 = vpop.f32.mrb[0].mxu0
      %v551 = vadd.f32 %v328, %v550
      %552 = vmatprep.mubr.f32.mxu0 0.0
      %553 = vmatmul.mubr.f32.gmra.mrb[0].mxu0 %v363
      %v554 = vpop.f32.mrb[0].mxu0
      %v555 = vadd.f32 %v324, %v554
      %v556 = vpop.f32.mrb[0].mxu0
      %v557 = vadd.f32 %v328, %v556
      %558 = vmatprep.mubr.f32.mxu0 0.0
      %559 = vmatmul.mubr.f32.gmra.mrb[0].mxu0 %v366
      %v560 = vpop.f32.mrb[0].mxu0
      %v561 = vadd.f32 %v324, %v560
      %v562 = vpop.f32.mrb[0].mxu0
      %v563 = vadd.f32 %v328, %v562
      %564 = vmatprep.mubr.f32.mxu0 0.0
      %565 = vmatmul.mubr.f32.gmra.mrb[0].mxu0 %v369
      %v566 = vpop.f32.mrb[0].mxu0
      %v567 = vadd.f32 %v324, %v566
      %v568 = vpop.f32.mrb[0].mxu0
      %v569 = vadd.f32 %v328, %v568
      %570 = vmatprep.mubr.f32.mxu0 0.0
      %571 = vmatmul.mubr.f32.gmra.mrb[0].mxu0 %v372
      %v572 = vpop.f32.mrb[0].mxu0
      %v573 = vadd.f32 %v324, %v572
      %v574 = vpop.f32.mrb[0].mxu0
      %v575 = vadd.f32 %v328, %v574
      %576 = vmatprep.mubr.f32.mxu0 0.0
      %577 = vmatmul.mubr.f32.gmra.mrb[0].mxu0 %v375
      %v578 = vpop.f32.mrb[0].mxu0
      %v579 = vadd.f32 %v324, %v578
      %v580 = vpop.f32.mrb[0].mxu0
      %v581 = vadd.f32 %v328, %v580
      %582 = vmatprep.mubr.f32.mxu0 0.0
      %583 = vmatmul.mubr.f32.gmra.mrb[0].mxu0 %v378
      %v584 = vpop.f32.mrb[0].mxu0
      %v585 = vadd.f32 %v324, %v584
      %v586 = vpop.f32.mrb[0].mxu0
      %v587 = vadd.f32 %v328, %v586
      %588 = vmatprep.mubr.f32.mxu0 0.0
      %589 = vmatmul.mubr.f32.gmra.mrb[0].mxu0 %v381
      %v590 = vpop.f32.mrb[0].mxu0
      %v591 = vadd.f32 %v324, %v590
      %v592 = vpop.f32.mrb[0].mxu0
      %v593 = vadd.f32 %v328, %v592
      %594 = vmatprep.mubr.f32.mxu0 0.0
      %595 = vmatmul.mubr.f32.gmra.mrb[0].mxu0 %v384
      %v596 = vpop.f32.mrb[0].mxu0
      %v597 = vadd.f32 %v324, %v596
      %v598 = vpop.f32.mrb[0].mxu0
      %v599 = vadd.f32 %v328, %v598
      %600 = vmatprep.mubr.f32.mxu0 0.0
      %601 = vmatmul.mubr.f32.gmra.mrb[0].mxu0 %v387
      %v602 = vpop.f32.mrb[0].mxu0
      %v603 = vadd.f32 %v324, %v602
      %v604 = vpop.f32.mrb[0].mxu0
      %v605 = vadd.f32 %v328, %v604
      %606 = vmatprep.mubr.f32.mxu0 0.0
      %607 = vmatmul.mubr.f32.gmra.mrb[0].mxu0 %v390
      %v608 = vpop.f32.mrb[0].mxu0
      %v609 = vadd.f32 %v324, %v608
      %v610 = vpop.f32.mrb[0].mxu0
      %v611 = vadd.f32 %v328, %v610
      %612 = vmatprep.mubr.f32.mxu0 0.0
      %613 = vmatmul.mubr.f32.gmra.mrb[0].mxu0 %v393
      %v614 = vpop.f32.mrb[0].mxu0
      %v615 = vadd.f32 %v324, %v614
      %v616 = vpop.f32.mrb[0].mxu0
      %v617 = vadd.f32 %v328, %v616
      %618 = vmatprep.mubr.f32.mxu0 0.0
      %619 = vmatmul.mubr.f32.gmra.mrb[0].mxu0 %v396
      %v620 = vpop.f32.mrb[0].mxu0
      %v621 = vadd.f32 %v324, %v620
      %v622 = vpop.f32.mrb[0].mxu0
      %v623 = vadd.f32 %v328, %v622
      %624 = vmatprep.mubr.f32.mxu0 0.0
      %625 = vmatmul.mubr.f32.gmra.mrb[0].mxu0 %v399
      %v626 = vpop.f32.mrb[0].mxu0
      %v627 = vadd.f32 %v324, %v626
      %v628 = vpop.f32.mrb[0].mxu0
      %v629 = vadd.f32 %v328, %v628
      %630 = vmatprep.mubr.f32.mxu0 0.0
      %631 = vmatmul.mubr.f32.gmra.mrb[0].mxu0 %v402
      %v632 = vpop.f32.mrb[0].mxu0
      %v633 = vadd.f32 %v324, %v632
      %v634 = vpop.f32.mrb[0].mxu0
      %v635 = vadd.f32 %v328, %v634
      %636 = vmatprep.mubr.f32.mxu0 0.0
      %637 = vmatmul.mubr.f32.gmra.mrb[0].mxu0 %v405
      %v638 = vpop.f32.mrb[0].mxu0
      %v639 = vadd.f32 %v324, %v638
      %v640 = vpop.f32.mrb[0].mxu0
      %v641 = vadd.f32 %v328, %v640
      %642 = vmatprep.mubr.f32.mxu0 0.0
      %643 = vmatmul.mubr.f32.gmra.mrb[0].mxu0 %v408
      %v644 = vpop.f32.mrb[0].mxu0
      %v645 = vadd.f32 %v324, %v644
      %v646 = vpop.f32.mrb[0].mxu0
      %v647 = vadd.f32 %v328, %v646
      %648 = vmatprep.mubr.f32.mxu0 0.0
      %649 = vmatmul.mubr.f32.gmra.mrb[0].mxu0 %v411
      %v650 = vpop.f32.mrb[0].mxu0
      %v651 = vadd.f32 %v324, %v650
      %v652 = vpop.f32.mrb[0].mxu0
      %v653 = vadd.f32 %v328, %v652
      %654 = vmatprep.mubr.f32.mxu0 0.0
      %655 = vmatmul.mubr.f32.gmra.mrb[0].mxu0 %v414
      %v656 = vpop.f32.mrb[0].mxu0
      %v657 = vadd.f32 %v324, %v656
      %v658 = vpop.f32.mrb[0].mxu0
      %v659 = vadd.f32 %v328, %v658
      %660 = vmatprep.mubr.f32.mxu0 0.0
      %661 = vmatmul.mubr.f32.gmra.mrb[0].mxu0 %v417
      %v662 = vpop.f32.mrb[0].mxu0
      %v663 = vadd.f32 %v324, %v662
      %v664 = vpop.f32.mrb[0].mxu0
      %v665 = vadd.f32 %v328, %v664
      %666 = vmatprep.mubr.f32.mxu0 0.0
      %667 = vmatmul.mubr.f32.gmra.mrb[0].mxu0 %v420
      %v668 = vpop.f32.mrb[0].mxu0
      %v669 = vadd.f32 %v324, %v668
      %v670 = vpop.f32.mrb[0].mxu0
      %v671 = vadd.f32 %v328, %v670
      %672 = vmatprep.mubr.f32.mxu0 0.0
      %673 = vmatmul.mubr.f32.gmra.mrb[0].mxu0 %v423
      %v674 = vpop.f32.mrb[0].mxu0
      %v675 = vadd.f32 %v324, %v674
      %v676 = vpop.f32.mrb[0].mxu0
      %v677 = vadd.f32 %v328, %v676
      %678 = vmatprep.mubr.f32.mxu0 0.0
      %679 = vmatmul.mubr.f32.gmra.mrb[0].mxu0 %v426
      %v680 = vpop.f32.mrb[0].mxu0
      %v681 = vadd.f32 %v324, %v680
      %v682 = vpop.f32.mrb[0].mxu0
      %v683 = vadd.f32 %v328, %v682
      %684 = vdwg.mxu0
      %685 = vst [vmem:[%s263] sm:$0xff] %v495
      %686 = vst [vmem:[%s263 + $0x8] sm:$0xff] %v497
      %687 = vst [vmem:[%s263 + $0x10] sm:$0xff] %v501
      %688 = vst [vmem:[%s263 + $0x18] sm:$0xff] %v503
      %689 = vst [vmem:[%s263 + $0x20] sm:$0xff] %v507
      %690 = vst [vmem:[%s263 + $0x28] sm:$0xff] %v509
      %691 = vst [vmem:[%s263 + $0x30] sm:$0xff] %v513
      %692 = vst [vmem:[%s263 + $0x38] sm:$0xff] %v515
      %693 = vst [vmem:[%s263 + $0x40] sm:$0xff] %v519
      %694 = vst [vmem:[%s263 + $0x48] sm:$0xff] %v521
      %695 = vst [vmem:[%s263 + $0x50] sm:$0xff] %v525
      %696 = vst [vmem:[%s263 + $0x58] sm:$0xff] %v527
      %697 = vst [vmem:[%s263 + $0x60] sm:$0xff] %v531
      %698 = vst [vmem:[%s263 + $0x68] sm:$0xff] %v533
      %699 = vst [vmem:[%s263 + $0x70] sm:$0xff] %v537
      %700 = vst [vmem:[%s263 + $0x78] sm:$0xff] %v539
      %701 = vst [vmem:[%s263 + $0x80] sm:$0xff] %v543
      %702 = vst [vmem:[%s263 + $0x88] sm:$0xff] %v545
      %703 = vst [vmem:[%s263 + $0x90] sm:$0xff] %v549
      %704 = vst [vmem:[%s263 + $0x98] sm:$0xff] %v551
      %705 = vst [vmem:[%s263 + $0xa0] sm:$0xff] %v555
      %706 = vst [vmem:[%s263 + $0xa8] sm:$0xff] %v557
      %707 = vst [vmem:[%s263 + $0xb0] sm:$0xff] %v561
      %708 = vst [vmem:[%s263 + $0xb8] sm:$0xff] %v563
      %709 = vst [vmem:[%s263 + $0xc0] sm:$0xff] %v567
      %710 = vst [vmem:[%s263 + $0xc8] sm:$0xff] %v569
      %711 = vst [vmem:[%s263 + $0xd0] sm:$0xff] %v573
      %712 = vst [vmem:[%s263 + $0xd8] sm:$0xff] %v575
      %713 = vst [vmem:[%s263 + $0xe0] sm:$0xff] %v579
      %714 = vst [vmem:[%s263 + $0xe8] sm:$0xff] %v581
      %715 = vst [vmem:[%s263 + $0xf0] sm:$0xff] %v585
      %716 = vst [vmem:[%s263 + $0xf8] sm:$0xff] %v587
      %717 = vst [vmem:[%s263 + $0x100] sm:$0xff] %v591
      %718 = vst [vmem:[%s263 + $0x108] sm:$0xff] %v593
      %719 = vst [vmem:[%s263 + $0x110] sm:$0xff] %v597
      %720 = vst [vmem:[%s263 + $0x118] sm:$0xff] %v599
      %721 = vst [vmem:[%s263 + $0x120] sm:$0xff] %v603
      %722 = vst [vmem:[%s263 + $0x128] sm:$0xff] %v605
      %723 = vst [vmem:[%s263 + $0x130] sm:$0xff] %v609
      %724 = vst [vmem:[%s263 + $0x138] sm:$0xff] %v611
      %725 = vst [vmem:[%s263 + $0x140] sm:$0xff] %v615
      %726 = vst [vmem:[%s263 + $0x148] sm:$0xff] %v617
      %727 = vst [vmem:[%s263 + $0x150] sm:$0xff] %v621
      %728 = vst [vmem:[%s263 + $0x158] sm:$0xff] %v623
      %729 = vst [vmem:[%s263 + $0x160] sm:$0xff] %v627
      %730 = vst [vmem:[%s263 + $0x168] sm:$0xff] %v629
      %731 = vst [vmem:[%s263 + $0x170] sm:$0xff] %v633
      %732 = vst [vmem:[%s263 + $0x178] sm:$0xff] %v635
      %733 = vst [vmem:[%s263 + $0x180] sm:$0xff] %v639
      %734 = vst [vmem:[%s263 + $0x188] sm:$0xff] %v641
      %735 = vst [vmem:[%s263 + $0x190] sm:$0xff] %v645
      %736 = vst [vmem:[%s263 + $0x198] sm:$0xff] %v647
      %737 = vst [vmem:[%s263 + $0x1a0] sm:$0xff] %v651
      %738 = vst [vmem:[%s263 + $0x1a8] sm:$0xff] %v653
      %739 = vst [vmem:[%s263 + $0x1b0] sm:$0xff] %v657
      %740 = vst [vmem:[%s263 + $0x1b8] sm:$0xff] %v659
      %741 = vst [vmem:[%s263 + $0x1c0] sm:$0xff] %v663
      %742 = vst [vmem:[%s263 + $0x1c8] sm:$0xff] %v665
      %743 = vst [vmem:[%s263 + $0x1d0] sm:$0xff] %v669
      %744 = vst [vmem:[%s263 + $0x1d8] sm:$0xff] %v671
      %745 = vst [vmem:[%s263 + $0x1e0] sm:$0xff] %v675
      %746 = vst [vmem:[%s263 + $0x1e8] sm:$0xff] %v677
      %747 = vst [vmem:[%s263 + $0x1f0] sm:$0xff] %v681
      %748 = vst [vmem:[%s263 + $0x1f8] sm:$0xff] %v683
      %v749 = vld [vmem:[%s3] sm:$0x1]
      %v751 = vlaneseq
      %v752 = vshrl.u32 %v751, 7
      %v753 = vsub.s32 0, %v752
      %v754 = vrot.slane %v749, %v753
      %v756 = vmul.f32 %v495, %v754
      %v757 = vmul.f32 %v501, %v754
      %v758 = vmul.f32 %v507, %v754
      %v759 = vmul.f32 %v513, %v754
      %v760 = vmul.f32 %v519, %v754
      %v761 = vmul.f32 %v525, %v754
      %v762 = vmul.f32 %v531, %v754
      %v763 = vmul.f32 %v537, %v754
      %v764 = vmul.f32 %v543, %v754
      %v765 = vmul.f32 %v549, %v754
      %v766 = vmul.f32 %v555, %v754
      %v767 = vmul.f32 %v561, %v754
      %v768 = vmul.f32 %v567, %v754
      %v769 = vmul.f32 %v573, %v754
      %v770 = vmul.f32 %v579, %v754
      %v771 = vmul.f32 %v585, %v754
      %v772 = vmul.f32 %v591, %v754
      %v773 = vmul.f32 %v597, %v754
      %v774 = vmul.f32 %v603, %v754
      %v775 = vmul.f32 %v609, %v754
      %v776 = vmul.f32 %v615, %v754
      %v777 = vmul.f32 %v621, %v754
      %v778 = vmul.f32 %v627, %v754
      %v779 = vmul.f32 %v633, %v754
      %v780 = vmul.f32 %v639, %v754
      %v781 = vmul.f32 %v645, %v754
      %v782 = vmul.f32 %v651, %v754
      %v783 = vmul.f32 %v657, %v754
      %v784 = vmul.f32 %v663, %v754
      %v785 = vmul.f32 %v669, %v754
      %v786 = vmul.f32 %v675, %v754
      %v787 = vmul.f32 %v681, %v754
      %788 = vadd.xlane.f32.xlu0 %v756
      %v789 = vpop.xlane.xlu0 %788
      %790 = vadd.xlane.f32.xlu0 %v757
      %v791 = vpop.xlane.xlu0 %790
      %792 = vadd.xlane.f32.xlu0 %v758
      %v793 = vpop.xlane.xlu0 %792
      %794 = vadd.xlane.f32.xlu0 %v759
      %v795 = vpop.xlane.xlu0 %794
      %796 = vadd.xlane.f32.xlu0 %v760
      %v797 = vpop.xlane.xlu0 %796
      %798 = vadd.xlane.f32.xlu0 %v761
      %v799 = vpop.xlane.xlu0 %798
      %800 = vadd.xlane.f32.xlu0 %v762
      %v801 = vpop.xlane.xlu0 %800
      %802 = vadd.xlane.f32.xlu0 %v763
      %v803 = vpop.xlane.xlu0 %802
      %804 = vadd.xlane.f32.xlu0 %v764
      %v805 = vpop.xlane.xlu0 %804
      %806 = vadd.xlane.f32.xlu0 %v765
      %v807 = vpop.xlane.xlu0 %806
      %808 = vadd.xlane.f32.xlu0 %v766
      %v809 = vpop.xlane.xlu0 %808
      %810 = vadd.xlane.f32.xlu0 %v767
      %v811 = vpop.xlane.xlu0 %810
      %812 = vadd.xlane.f32.xlu0 %v768
      %v813 = vpop.xlane.xlu0 %812
      %814 = vadd.xlane.f32.xlu0 %v769
      %v815 = vpop.xlane.xlu0 %814
      %816 = vadd.xlane.f32.xlu0 %v770
      %v817 = vpop.xlane.xlu0 %816
      %818 = vadd.xlane.f32.xlu0 %v771
      %v819 = vpop.xlane.xlu0 %818
      %820 = vadd.xlane.f32.xlu0 %v772
      %v821 = vpop.xlane.xlu0 %820
      %822 = vadd.xlane.f32.xlu0 %v773
      %v823 = vpop.xlane.xlu0 %822
      %824 = vadd.xlane.f32.xlu0 %v774
      %v825 = vpop.xlane.xlu0 %824
      %826 = vadd.xlane.f32.xlu0 %v775
      %v827 = vpop.xlane.xlu0 %826
      %828 = vadd.xlane.f32.xlu0 %v776
      %v829 = vpop.xlane.xlu0 %828
      %830 = vadd.xlane.f32.xlu0 %v777
      %v831 = vpop.xlane.xlu0 %830
      %832 = vadd.xlane.f32.xlu0 %v778
      %v833 = vpop.xlane.xlu0 %832
      %834 = vadd.xlane.f32.xlu0 %v779
      %v835 = vpop.xlane.xlu0 %834
      %836 = vadd.xlane.f32.xlu0 %v780
      %v837 = vpop.xlane.xlu0 %836
      %838 = vadd.xlane.f32.xlu0 %v781
      %v839 = vpop.xlane.xlu0 %838
      %840 = vadd.xlane.f32.xlu0 %v782
      %v841 = vpop.xlane.xlu0 %840
      %842 = vadd.xlane.f32.xlu0 %v783
      %v843 = vpop.xlane.xlu0 %842
      %844 = vadd.xlane.f32.xlu0 %v784
      %v845 = vpop.xlane.xlu0 %844
      %846 = vadd.xlane.f32.xlu0 %v785
      %v847 = vpop.xlane.xlu0 %846
      %848 = vadd.xlane.f32.xlu0 %v786
      %v849 = vpop.xlane.xlu0 %848
      %850 = vadd.xlane.f32.xlu0 %v787
      %v851 = vpop.xlane.xlu0 %850
      %v852 = vld [vmem:[%s4] sm:$0x1]
      %v854 = vlaneseq
      %v855 = vshrl.u32 %v854, 7
      %v856 = vsub.s32 0, %v855
      %v857 = vrot.slane %v852, %v856
      %v859 = vadd.f32 %v789, %v857
      %v860 = vadd.f32 %v791, %v857
      %v861 = vadd.f32 %v793, %v857
      %v862 = vadd.f32 %v795, %v857
      %v863 = vadd.f32 %v797, %v857
      %v864 = vadd.f32 %v799, %v857
      %v865 = vadd.f32 %v801, %v857
      %v866 = vadd.f32 %v803, %v857
      %v867 = vadd.f32 %v805, %v857
      %v868 = vadd.f32 %v807, %v857
      %v869 = vadd.f32 %v809, %v857
      %v870 = vadd.f32 %v811, %v857
      %v871 = vadd.f32 %v813, %v857
      %v872 = vadd.f32 %v815, %v857
      %v873 = vadd.f32 %v817, %v857
      %v874 = vadd.f32 %v819, %v857
      %v875 = vadd.f32 %v821, %v857
      %v876 = vadd.f32 %v823, %v857
      %v877 = vadd.f32 %v825, %v857
      %v878 = vadd.f32 %v827, %v857
      %v879 = vadd.f32 %v829, %v857
      %v880 = vadd.f32 %v831, %v857
      %v881 = vadd.f32 %v833, %v857
      %v882 = vadd.f32 %v835, %v857
      %v883 = vadd.f32 %v837, %v857
      %v884 = vadd.f32 %v839, %v857
      %v885 = vadd.f32 %v841, %v857
      %v886 = vadd.f32 %v843, %v857
      %v887 = vadd.f32 %v845, %v857
      %v888 = vadd.f32 %v847, %v857
      %v889 = vadd.f32 %v849, %v857
      %v890 = vadd.f32 %v851, %v857
      %891 = vst [vmem:[%s269] sm:$0xff] %v859
      %892 = vst [vmem:[%s269 + $0x8] sm:$0xff] %v860
      %893 = vst [vmem:[%s269 + $0x10] sm:$0xff] %v861
      %894 = vst [vmem:[%s269 + $0x18] sm:$0xff] %v862
      %895 = vst [vmem:[%s269 + $0x20] sm:$0xff] %v863
      %896 = vst [vmem:[%s269 + $0x28] sm:$0xff] %v864
      %897 = vst [vmem:[%s269 + $0x30] sm:$0xff] %v865
      %898 = vst [vmem:[%s269 + $0x38] sm:$0xff] %v866
      %899 = vst [vmem:[%s269 + $0x40] sm:$0xff] %v867
      %900 = vst [vmem:[%s269 + $0x48] sm:$0xff] %v868
      %901 = vst [vmem:[%s269 + $0x50] sm:$0xff] %v869
      %902 = vst [vmem:[%s269 + $0x58] sm:$0xff] %v870
      %903 = vst [vmem:[%s269 + $0x60] sm:$0xff] %v871
      %904 = vst [vmem:[%s269 + $0x68] sm:$0xff] %v872
      %905 = vst [vmem:[%s269 + $0x70] sm:$0xff] %v873
      %906 = vst [vmem:[%s269 + $0x78] sm:$0xff] %v874
      %907 = vst [vmem:[%s269 + $0x80] sm:$0xff] %v875
      %908 = vst [vmem:[%s269 + $0x88] sm:$0xff] %v876
      %909 = vst [vmem:[%s269 + $0x90] sm:$0xff] %v877
      %910 = vst [vmem:[%s269 + $0x98] sm:$0xff] %v878
      %911 = vst [vmem:[%s269 + $0xa0] sm:$0xff] %v879
      %912 = vst [vmem:[%s269 + $0xa8] sm:$0xff] %v880
      %913 = vst [vmem:[%s269 + $0xb0] sm:$0xff] %v881
      %914 = vst [vmem:[%s269 + $0xb8] sm:$0xff] %v882
      %915 = vst [vmem:[%s269 + $0xc0] sm:$0xff] %v883
      %916 = vst [vmem:[%s269 + $0xc8] sm:$0xff] %v884
      %917 = vst [vmem:[%s269 + $0xd0] sm:$0xff] %v885
      %918 = vst [vmem:[%s269 + $0xd8] sm:$0xff] %v886
      %919 = vst [vmem:[%s269 + $0xe0] sm:$0xff] %v887
      %920 = vst [vmem:[%s269 + $0xe8] sm:$0xff] %v888
      %921 = vst [vmem:[%s269 + $0xf0] sm:$0xff] %v889
      %922 = vst [vmem:[%s269 + $0xf8] sm:$0xff] %v890
      %s923 = smul.u32 32, %s18
      %p924 = scmp.lt.s32.totalorder %s923, 63
      %s925 = scalar_select %p924, %s923, 63
      %s926 = smul.addr %s925, 2
      %s927 = smul.addr %s926, 8
      %s928 = scalar_lea.vmem %s5, %s927
      %s929 = smul.u32 32, %s18
      %p930 = scmp.lt.s32.totalorder %s929, 63
      %s931 = scalar_select %p930, %s929, 63
      %s932 = smul.addr %s931, 8
      %s933 = scalar_lea.vmem %s6, %s932
      // Predicated region
      $region41: #{crakn_forward.1} parent=39 // pred_check
        %p934 = pneg %p146
      $region42: #{crakn_forward.1} parent=39 // pred_check_branch
        %936 = sbr.rel (%p934) target = $region44
      $region43: #{crakn_forward.1} parent=39 // pred_region
        %s937 = smul.u32 32, %s18
      $region44: #{crakn_forward.1} parent=39 // pred_fallthru
        _
      // Predicated region
      $region45: #{crakn_forward.1} parent=39 // pred_check
        %p938 = pneg %p172
      $region46: #{crakn_forward.1} parent=39 // pred_check_branch
        %940 = sbr.rel (%p938) target = $region48
      $region47: #{crakn_forward.1} parent=39 // pred_region
        %s941 = smul.u32 32, %s18
      $region48: #{crakn_forward.1} parent=39 // pred_fallthru
        _
    $region40: #{crakn_forward.1} parent=5 // pred_fallthru
      _
    %p942 = scmp.le.s32.totalorder 2, %s13
    // Predicated region
    $region49: #{crakn_forward.1} parent=5 // pred_check
      %p943 = pneg %p942
    $region50: #{crakn_forward.1} parent=5 // pred_check_branch
      %945 = sbr.rel (%p943) target = $region52
    $region51: #{crakn_forward.1} parent=5 // pred_region
      %s946 = ssub.s32 %s13, 2
      // Predicated region
      $region53: #{crakn_forward.1} parent=51 // pred_check
        %p947 = pneg %p152
      $region54: #{crakn_forward.1} parent=51 // pred_check_branch
        %949 = sbr.rel (%p947) target = $region56
      $region55: #{crakn_forward.1} parent=51 // pred_region
        %s950 = smul.u32 32, %s19
        %p951 = scmp.lt.s32.totalorder %s950, 63
        %s952 = scalar_select %p951, %s950, 63
        %s953 = smul.addr %s952, 2
        %s954 = smul.addr %s953, 8
        %s955 = scalar_lea.vmem %s5, %s954
      $region56: #{crakn_forward.1} parent=51 // pred_fallthru
        _
      // Predicated region
      $region57: #{crakn_forward.1} parent=51 // pred_check
        %p956 = pneg %p178
      $region58: #{crakn_forward.1} parent=51 // pred_check_branch
        %958 = sbr.rel (%p956) target = $region60
      $region59: #{crakn_forward.1} parent=51 // pred_region
        %s959 = smul.u32 32, %s19
        %p960 = scmp.lt.s32.totalorder %s959, 63
        %s961 = scalar_select %p960, %s959, 63
        %s962 = smul.addr %s961, 8
        %s963 = scalar_lea.vmem %s6, %s962
      $region60: #{crakn_forward.1} parent=51 // pred_fallthru
        _
    $region52: #{crakn_forward.1} parent=5 // pred_fallthru
      _
  $region6: #{crakn_forward.1} parent=0 // loop_footer
    %s17 = sadd.s32 1, %s13
  $region7: #{crakn_forward.1} parent=0 // loop_footer_branch
    %12 = sbr.rel target = $region3
  $region8: #{crakn_forward.1} parent=0 // loop_exit
    _

</llo_original>
